<compile_context>
chip_gen: v6e
topology: v6e:2x2x1
jax: 0.10.0
libtpu: 0.0.40
codegen_flags: <defaults>
</compile_context>

<pallas_src>
import functools

import jax
import jax.numpy as jnp
from jax import lax
from jax.experimental import pallas as pl
from jax.experimental.pallas import tpu as pltpu

D_STATE = 3
D_HIDDEN = 128


def _model_action_kernel(state_ref, w1_ref, b1_ref, wh_ref, bh_ref, eps_ref,
                         out_ref, *, chunk):
    """One batch tile.  state_ref (3, tb), eps_ref/out_ref (1, tb)."""
    tb = out_ref.shape[1]
    n_chunks = tb // chunk          # static

    w1 = w1_ref[...]                # (128, 3)  torch (out, in) layout
    # Loop-invariant lane-broadcasts hoisted out of the chunk loop
    # (JAX does not CSE broadcast_in_dim; re-broadcasting per chunk repeats
    # XLU work).
    w1b0 = jnp.broadcast_to(w1[:, 0:1], (D_HIDDEN, chunk))
    w1b1 = jnp.broadcast_to(w1[:, 1:2], (D_HIDDEN, chunk))
    w1b2 = jnp.broadcast_to(w1[:, 2:3], (D_HIDDEN, chunk))
    b1b = jnp.broadcast_to(b1_ref[...], (D_HIDDEN, chunk))
    wh = wh_ref[...]                # (2, 128) fused [fc_mu; fc_std] weights
    b_mu = bh_ref[0]                # scalar head biases live in SMEM (1-D!)
    b_std = bh_ref[1]

    def body(c, carry):
        off = pl.multiple_of(c * chunk, chunk)
        x = state_ref[:, pl.ds(off, chunk)]                  # (3, chunk)

        # fc_state: Linear(3,128)+ReLU on the VPU (K=3 would leave the MXU
        # >97% idle).  h_chunk is consumed immediately, never spilled.
        h = w1b0 * x[0:1, :] + w1b1 * x[1:2, :] + w1b2 * x[2:3, :] + b1b
        h = jnp.maximum(h, 0.0)                              # (128, chunk)

        # fc_mu + fc_std fused into one (2,128)@(128,chunk) MXU pass,
        # default precision (single bf16 pass) per perf review.
        y = jnp.dot(wh, h, preferred_element_type=jnp.float32)   # (2, chunk)
        mu = y[0:1, :] + b_mu
        z = y[1:2, :] + b_std

        # PyTorch softplus (beta=1, threshold=20), then clamp(min=1e-6)
        sp = jnp.where(z > 20.0, z,
                       jnp.log1p(jnp.exp(jnp.minimum(z, 20.0))))
        std = jnp.maximum(sp, 1e-6)

        # Normal(mu, std).rsample() -> tanh -> * 35
        sample = mu + std * eps_ref[:, pl.ds(off, chunk)]
        out_ref[:, pl.ds(off, chunk)] = jnp.tanh(sample) * 35.0
        return carry

    lax.fori_loop(0, n_chunks, body, 0, unroll=True)


def model_action_tb(state_t, params, eps_t, *, block_b=4096):
    """Core entry point, (features, batch) layout.

    state_t: (3, B_pad) f32, eps_t: (1, B_pad) f32, B_pad a multiple of 128.
    Returns (1, B_pad) f32.  No layout plumbing on this path.
    """
    w1, b1, w_heads, b_heads = params
    feat, b_pad = state_t.shape
    assert feat == D_STATE and b_pad % 128 == 0

    tb = max(128, (min(block_b, b_pad) // 128) * 128)
    while b_pad % tb:               # tb must divide the padded batch
        tb -= 128
    chunk = 256 if tb % 256 == 0 else 128   # hidden chunk: <=32 vregs of h
    grid = (b_pad // tb,)

    kernel = functools.partial(_model_action_kernel, chunk=chunk)
    return pl.pallas_call(
        kernel,
        out_shape=jax.ShapeDtypeStruct((1, b_pad), jnp.float32),
        grid=grid,
        in_specs=[
            pl.BlockSpec((D_STATE, tb), lambda i: (0, i)),          # state tile
            pl.BlockSpec((D_HIDDEN, D_STATE), lambda i: (0, 0)),    # w1 resident
            pl.BlockSpec((D_HIDDEN, 1), lambda i: (0, 0)),          # b1 resident
            pl.BlockSpec((2, D_HIDDEN), lambda i: (0, 0)),          # fused heads W
            pl.BlockSpec(memory_space=pltpu.MemorySpace.SMEM),      # head biases
            pl.BlockSpec((1, tb), lambda i: (0, i)),                # eps tile
        ],
        out_specs=pl.BlockSpec((1, tb), lambda i: (0, i)),          # lane-dense out
        compiler_params=pltpu.CompilerParams(
            dimension_semantics=("parallel",)),
    )(state_t, w1, b1, w_heads, b_heads, eps_t)


def model_action(state, params, eps, *, block_b=4096):
    """Convenience wrapper: state (B, 3), eps (B, 1) -> (B, 1)."""
    B = state.shape[0]
    b_pad = ((B + 127) // 128) * 128
    tb = max(128, (min(block_b, b_pad) // 128) * 128)
    b_pad = ((b_pad + tb - 1) // tb) * tb

    # Layout plumbing for callers stuck on (B, 3); hot paths should call
    # model_action_tb directly with the (features, batch) layout.
    state_t = jnp.pad(state, ((0, b_pad - B), (0, 0))).T            # (3, b_pad)
    eps_t = jnp.pad(eps.reshape(B, 1), ((0, b_pad - B), (0, 0))).T  # (1, b_pad)

    out_t = model_action_tb(state_t, params, eps_t, block_b=tb)
    return out_t[0, :B].reshape(B, 1)


def init_params(key):
    """PyTorch-style uniform(-1/sqrt(fan_in), 1/sqrt(fan_in)) init.

    Kernel layouts:
      w1      (128, 3)  -- fc_state[0].weight, torch (out, in) layout
      b1      (128, 1)  -- column vector for the batch-on-lanes layout
      w_heads (2, 128)  -- rows = [fc_mu.weight, fc_std[0].weight]
      b_heads (2,)      -- [fc_mu.bias, fc_std[0].bias] (lives in SMEM, 1-D)
    """
    ks = jax.random.split(key, 6)

    def lin(kw, kb, fan_in, fan_out):
        bound = 1.0 / jnp.sqrt(jnp.float32(fan_in))
        w = jax.random.uniform(kw, (fan_out, fan_in), jnp.float32, -bound, bound)
        b = jax.random.uniform(kb, (fan_out,), jnp.float32, -bound, bound)
        return w, b

    w1, b1 = lin(ks[0], ks[1], 3, 128)     # fc_state
    w2, b2 = lin(ks[2], ks[3], 128, 1)     # fc_mu
    w3, b3 = lin(ks[4], ks[5], 128, 1)     # fc_std

    w_heads = jnp.concatenate([w2, w3], axis=0)      # (2, 128)
    b_heads = jnp.concatenate([b2, b3], axis=0)      # (2,)
    return (w1, b1.reshape(D_HIDDEN, 1), w_heads, b_heads)


def model_action_ref(state, params, eps):
    """Pure-JAX f32 reference (mirrors the PyTorch forward)."""
    w1, b1, w_heads, b_heads = params
    hp = jax.lax.Precision.HIGHEST
    h = jnp.maximum(jnp.dot(state, w1.T, precision=hp) + b1.reshape(1, -1), 0.0)
    y = jnp.dot(h, w_heads.T, precision=hp) + b_heads.reshape(1, -1)
    mu, z = y[:, 0:1], y[:, 1:2]
    sp = jnp.where(z > 20.0, z, jnp.log1p(jnp.exp(jnp.minimum(z, 20.0))))
    std = jnp.maximum(sp, 1e-6)
    return jnp.tanh(mu + std * eps) * 35.0


if __name__ == "__main__":
    key = jax.random.PRNGKey(0)
    k_param, k_data, _ = jax.random.split(key, 3)
    params = init_params(k_param)

    def run_case(B, block_b):
        ks, ke = jax.random.split(jax.random.fold_in(k_data, B), 2)
        state = jax.random.normal(ks, (B, D_STATE), jnp.float32)
        eps = jax.random.normal(ke, (B, 1), jnp.float32)      # rsample noise
        act = model_action(state, params, eps, block_b=block_b)
        jax.block_until_ready(act)
        ref = model_action_ref(state, params, eps)
        assert act.shape == (B, 1)
        assert bool(jnp.all(jnp.isfinite(act)))
        assert bool(jnp.all(jnp.abs(act) <= 35.0))
        # Tolerance budget: the only deviation vs the f32 reference is the
        # single-pass bf16 operand rounding of the tiny (2,128) MXU head
        # matmul (default precision, per perf review), amplified by <=35
        # through tanh; everything else (layer 1, softplus, tanh) is f32.
        assert bool(jnp.allclose(act, ref, atol=0.5, rtol=0.02)), (B, block_b)

    run_case(8, 4096)      # single 128-lane tile, single chunk
    run_case(300, 128)     # pipelined grid of 3 steps, resident weights
    run_case(1500, 4096)   # one 1536-lane tile, 6 x 256-lane hidden chunks

    print("KERNEL_OK")
</pallas_src>

<mosaic_0001>
module attributes {stable_mosaic.version = 11 : i64} {
  func.func @_model_action_kernel(%arg0: i32, %arg1: memref<3x128xf32, #tpu.memory_space<vmem>>, %arg2: memref<128x3xf32, #tpu.memory_space<vmem>>, %arg3: memref<128x1xf32, #tpu.memory_space<vmem>>, %arg4: memref<2x128xf32, #tpu.memory_space<vmem>>, %arg5: memref<2xf32, #tpu.memory_space<smem>>, %arg6: memref<1x128xf32, #tpu.memory_space<vmem>>, %arg7: memref<1x128xf32, #tpu.memory_space<vmem>>) attributes {dimension_semantics = [#tpu.dimension_semantics<parallel>], iteration_bounds = array<i64: 1>, scalar_prefetch = 0 : i64, scratch_operands = 0 : i64, tpu.core_type = #tpu.core_type<tc>, window_params = [{transform_indices = @transform_0, window_bounds = array<i64: 3, 128>}, {pipeline_mode = #tpu.pipeline_mode<synchronous>, transform_indices = @transform_1, window_bounds = array<i64: 128, 3>}, {pipeline_mode = #tpu.pipeline_mode<synchronous>, transform_indices = @transform_2, window_bounds = array<i64: 128, 1>}, {pipeline_mode = #tpu.pipeline_mode<synchronous>, transform_indices = @transform_3, window_bounds = array<i64: 2, 128>}, {transform_indices = @transform_4, window_bounds = array<i64: 2>}, {transform_indices = @transform_5, window_bounds = array<i64: 1, 128>}, {transform_indices = @transform_6, window_bounds = array<i64: 1, 128>}]} {
    %c0 = arith.constant 0 : index
    %c0_0 = arith.constant 0 : index
    %0 = vector.load %arg2[%c0, %c0_0] : memref<128x3xf32, #tpu.memory_space<vmem>>, vector<128x3xf32>
    %1 = vector.extract_strided_slice %0 {offsets = [0, 0], sizes = [128, 1], strides = [1, 1]} : vector<128x3xf32> to vector<128x1xf32>
    %2 = vector.shape_cast %1 : vector<128x1xf32> to vector<128x1xf32>
    %3 = vector.broadcast %2 : vector<128x1xf32> to vector<128x128xf32>
    %4 = vector.extract_strided_slice %0 {offsets = [0, 1], sizes = [128, 1], strides = [1, 1]} : vector<128x3xf32> to vector<128x1xf32>
    %5 = vector.shape_cast %4 : vector<128x1xf32> to vector<128x1xf32>
    %6 = vector.broadcast %5 : vector<128x1xf32> to vector<128x128xf32>
    %7 = vector.extract_strided_slice %0 {offsets = [0, 2], sizes = [128, 1], strides = [1, 1]} : vector<128x3xf32> to vector<128x1xf32>
    %8 = vector.shape_cast %7 : vector<128x1xf32> to vector<128x1xf32>
    %9 = vector.broadcast %8 : vector<128x1xf32> to vector<128x128xf32>
    %c0_1 = arith.constant 0 : index
    %c0_2 = arith.constant 0 : index
    %10 = vector.load %arg3[%c0_1, %c0_2] : memref<128x1xf32, #tpu.memory_space<vmem>>, vector<128x1xf32>
    %11 = vector.shape_cast %10 : vector<128x1xf32> to vector<128x1xf32>
    %12 = vector.broadcast %11 : vector<128x1xf32> to vector<128x128xf32>
    %c0_3 = arith.constant 0 : index
    %c0_4 = arith.constant 0 : index
    %13 = vector.load %arg4[%c0_3, %c0_4] : memref<2x128xf32, #tpu.memory_space<vmem>>, vector<2x128xf32>
    %c0_5 = arith.constant 0 : index
    %14 = memref.load %arg5[%c0_5] : memref<2xf32, #tpu.memory_space<smem>>
    %c1 = arith.constant 1 : index
    %15 = memref.load %arg5[%c1] : memref<2xf32, #tpu.memory_space<smem>>
    %c0_i32 = arith.constant 0 : i32
    %c128_i32 = arith.constant 128 : i32
    %16 = arith.muli %c0_i32, %c128_i32 : i32
    %17 = tpu.assume_multiple %16, 128 : i32
    %c0_6 = arith.constant 0 : index
    %18 = arith.index_cast %17 : i32 to index
    %19 = vector.load %arg1[%c0_6, %18] : memref<3x128xf32, #tpu.memory_space<vmem>>, vector<3x128xf32>
    %20 = vector.extract_strided_slice %19 {offsets = [0, 0], sizes = [1, 128], strides = [1, 1]} : vector<3x128xf32> to vector<1x128xf32>
    %21 = vector.broadcast %20 : vector<1x128xf32> to vector<128x128xf32>
    %22 = arith.mulf %3, %21 : vector<128x128xf32>
    %23 = vector.extract_strided_slice %19 {offsets = [1, 0], sizes = [1, 128], strides = [1, 1]} : vector<3x128xf32> to vector<1x128xf32>
    %24 = vector.broadcast %23 : vector<1x128xf32> to vector<128x128xf32>
    %25 = arith.mulf %6, %24 : vector<128x128xf32>
    %26 = arith.addf %22, %25 : vector<128x128xf32>
    %27 = vector.extract_strided_slice %19 {offsets = [2, 0], sizes = [1, 128], strides = [1, 1]} : vector<3x128xf32> to vector<1x128xf32>
    %28 = vector.broadcast %27 : vector<1x128xf32> to vector<128x128xf32>
    %29 = arith.mulf %9, %28 : vector<128x128xf32>
    %30 = arith.addf %26, %29 : vector<128x128xf32>
    %31 = arith.addf %30, %12 : vector<128x128xf32>
    %cst = arith.constant 0.000000e+00 : f32
    %32 = vector.broadcast %cst : f32 to vector<128x128xf32>
    %33 = arith.maximumf %31, %32 : vector<128x128xf32>
    %cst_7 = arith.constant dense<0.000000e+00> : vector<2x128xf32>
    %34 = tpu.matmul %13, %33, %cst_7 {dimension_numbers = #tpu.dot_dimension_numbers<[1], [0], [0], [1], [0, 0, 1, 1], [], []>} : vector<2x128xf32>, vector<128x128xf32>, vector<2x128xf32> -> vector<2x128xf32>
    %35 = vector.extract_strided_slice %34 {offsets = [0, 0], sizes = [1, 128], strides = [1, 1]} : vector<2x128xf32> to vector<1x128xf32>
    %36 = vector.broadcast %14 : f32 to vector<1x128xf32>
    %37 = arith.addf %35, %36 : vector<1x128xf32>
    %38 = vector.extract_strided_slice %34 {offsets = [1, 0], sizes = [1, 128], strides = [1, 1]} : vector<2x128xf32> to vector<1x128xf32>
    %39 = vector.broadcast %15 : f32 to vector<1x128xf32>
    %40 = arith.addf %38, %39 : vector<1x128xf32>
    %cst_8 = arith.constant 2.000000e+01 : f32
    %41 = vector.broadcast %cst_8 : f32 to vector<1x128xf32>
    %42 = arith.cmpf ogt, %40, %41 : vector<1x128xf32>
    %cst_9 = arith.constant 2.000000e+01 : f32
    %43 = vector.broadcast %cst_9 : f32 to vector<1x128xf32>
    %44 = arith.minimumf %40, %43 : vector<1x128xf32>
    %45 = math.exp %44 : vector<1x128xf32>
    %46 = math.log1p %45 : vector<1x128xf32>
    %47 = arith.select %42, %40, %46 : vector<1x128xi1>, vector<1x128xf32>
    %cst_10 = arith.constant 9.99999997E-7 : f32
    %48 = vector.broadcast %cst_10 : f32 to vector<1x128xf32>
    %49 = arith.maximumf %47, %48 : vector<1x128xf32>
    %c0_11 = arith.constant 0 : index
    %50 = arith.index_cast %17 : i32 to index
    %51 = vector.load %arg6[%c0_11, %50] : memref<1x128xf32, #tpu.memory_space<vmem>>, vector<1x128xf32>
    %52 = arith.mulf %49, %51 : vector<1x128xf32>
    %53 = arith.addf %37, %52 : vector<1x128xf32>
    %54 = math.tanh %53 : vector<1x128xf32>
    %cst_12 = arith.constant 3.500000e+01 : f32
    %55 = vector.broadcast %cst_12 : f32 to vector<1x128xf32>
    %56 = arith.mulf %54, %55 : vector<1x128xf32>
    %c0_13 = arith.constant 0 : index
    %57 = arith.index_cast %17 : i32 to index
    %58 = vector.load %arg7[%c0_13, %57] : memref<1x128xf32, #tpu.memory_space<vmem>>, vector<1x128xf32>
    tpu.vector_store %arg7[%c0_13, %57], %56 {strides = array<i32>} : memref<1x128xf32, #tpu.memory_space<vmem>>, vector<1x128xf32>,
    %c1_i32 = arith.constant 1 : i32
    return
  }
  func.func @transform_0(%arg0: i32) -> (i32, i32) {
    %c0_i32 = arith.constant 0 : i32
    %c0_i32_0 = arith.constant 0 : i32
    return %c0_i32, %arg0 : i32, i32
  }
  func.func @transform_1(%arg0: i32) -> (i32, i32) {
    %c0_i32 = arith.constant 0 : i32
    %c0_i32_0 = arith.constant 0 : i32
    %c0_i32_1 = arith.constant 0 : i32
    return %c0_i32, %c0_i32_0 : i32, i32
  }
  func.func @transform_2(%arg0: i32) -> (i32, i32) {
    %c0_i32 = arith.constant 0 : i32
    %c0_i32_0 = arith.constant 0 : i32
    %c0_i32_1 = arith.constant 0 : i32
    return %c0_i32, %c0_i32_0 : i32, i32
  }
  func.func @transform_3(%arg0: i32) -> (i32, i32) {
    %c0_i32 = arith.constant 0 : i32
    %c0_i32_0 = arith.constant 0 : i32
    %c0_i32_1 = arith.constant 0 : i32
    return %c0_i32, %c0_i32_0 : i32, i32
  }
  func.func @transform_4(%arg0: i32) -> i32 {
    %c0_i32 = arith.constant 0 : i32
    %c0_i32_0 = arith.constant 0 : i32
    return %c0_i32 : i32
  }
  func.func @transform_5(%arg0: i32) -> (i32, i32) {
    %c0_i32 = arith.constant 0 : i32
    %c0_i32_0 = arith.constant 0 : i32
    return %c0_i32, %arg0 : i32, i32
  }
  func.func @transform_6(%arg0: i32) -> (i32, i32) {
    %c0_i32 = arith.constant 0 : i32
    %c0_i32_0 = arith.constant 0 : i32
    return %c0_i32, %arg0 : i32, i32
  }
}

</mosaic_0001>

<llo_original>
// kernel: tpu_custom_call.1
$region0: #{tpu_custom_call.1}
  #allocation0 [shape = 'u32[]', space=smem, size = 0x4, offset = 0x4, fixed_abs, tag = 'smem constant byte address 0x4 - core index']
  #allocation1 [shape = 'u32[144,128]{1,0:T(1,128)}', space=vmem, size = 0x12000, scoped, tag = 'internal scratch']
  %s0 = inlined_call_operand.vmem [shape: f32[3,128], index: 0, kind: input, shape index: {}]
  %s1 = inlined_call_operand.vmem [shape: f32[128,3], index: 1, kind: input, shape index: {}]
  %s2 = inlined_call_operand.vmem [shape: f32[128,1], index: 2, kind: input, shape index: {}]
  %s3 = inlined_call_operand.vmem [shape: f32[2,128], index: 3, kind: input, shape index: {}]
  %s4 = inlined_call_operand.vmem [shape: f32[2], index: 4, kind: input, shape index: {}]
  %s5 = inlined_call_operand.vmem [shape: f32[1,128], index: 5, kind: input, shape index: {}]
  %s6 = inlined_call_operand.hbm [shape: f32[1,128], index: 6, kind: output, shape index: {}]
  %s7 = sld [smem:[#allocation0]]
  $region38: #{tpu_custom_call.1} parent=0
    _
  %s9 = ssub.s32 1, %s7
  %s10 = scalar_select 0, %s9, %s7
  $region1: #{tpu_custom_call.1} parent=0
    #allocation2 [shape = 'u8[512]{0}', space=smem, size = 0x200, scoped, tag = 'input window, operand 4, single buffered']
    #allocation3 [shape = 's32[1]{0}', space=sflag, size = 0x4, scoped, tag = 'scoped memory for tpu_custom_call.1']
    #allocation4 [shape = 's32[1]{0}', space=sflag, size = 0x4, scoped, tag = 'scoped memory for tpu_custom_call.1']
    #allocation5 [shape = 'u8[512]{0}', space=vmem, size = 0x400, scoped, tag = 'output window, operand 0, single buffered']
    %11 = vsyncpa [#allocation4], 0
    %12 = vsyncpa [#allocation3], 0
    // Predicated region
    $region2: #{tpu_custom_call.1} parent=1 // pred_check
      _
    $region3: #{tpu_custom_call.1} parent=1 // pred_check_branch
      %14 = sbr.rel (0) target = $region5
    $region4: #{tpu_custom_call.1} parent=1 // pred_region
      _
    $region5: #{tpu_custom_call.1} parent=1 // pred_fallthru
      _
    // Predicated region
    $region6: #{tpu_custom_call.1} parent=1 // pred_check
      _
    $region7: #{tpu_custom_call.1} parent=1 // pred_check_branch
      %16 = sbr.rel (0) target = $region9
    $region8: #{tpu_custom_call.1} parent=1 // pred_region
      _
    $region9: #{tpu_custom_call.1} parent=1 // pred_fallthru
      _
    // Predicated region
    $region10: #{tpu_custom_call.1} parent=1 // pred_check
      _
    $region11: #{tpu_custom_call.1} parent=1 // pred_check_branch
      %18 = sbr.rel (0) target = $region13
    $region12: #{tpu_custom_call.1} parent=1 // pred_region
      _
    $region13: #{tpu_custom_call.1} parent=1 // pred_fallthru
      _
    // Predicated region
    $region14: #{tpu_custom_call.1} parent=1 // pred_check
      _
    $region15: #{tpu_custom_call.1} parent=1 // pred_check_branch
      %20 = sbr.rel (0) target = $region17
    $region16: #{tpu_custom_call.1} parent=1 // pred_region
      _
    $region17: #{tpu_custom_call.1} parent=1 // pred_fallthru
      _
    // Predicated region
    $region18: #{tpu_custom_call.1} parent=1 // pred_check
      _
    $region19: #{tpu_custom_call.1} parent=1 // pred_check_branch
      %22 = sbr.rel (0) target = $region21
    $region20: #{tpu_custom_call.1} parent=1 // pred_region
      %s24 = ssub.s32 16, 16
      %25 = vsyncadd [#allocation4], %s24
      %s27 = sshll.u32 %s4, 4
      %s28 = int_to_ptr.vmem [resolvable:$true] %s27
      %30 = dma.vmem_to_smem %s28, 16, [#allocation2], [#allocation4]
    $region21: #{tpu_custom_call.1} parent=1 // pred_fallthru
      _
    // Predicated region
    $region22: #{tpu_custom_call.1} parent=1 // pred_check
      _
    $region23: #{tpu_custom_call.1} parent=1 // pred_check_branch
      %32 = sbr.rel (0) target = $region25
    $region24: #{tpu_custom_call.1} parent=1 // pred_region
      _
    $region25: #{tpu_custom_call.1} parent=1 // pred_fallthru
      _
    // Predicated region
    $region26: #{tpu_custom_call.1} parent=1 // pred_check
      _
    $region27: #{tpu_custom_call.1} parent=1 // pred_check_branch
      %34 = sbr.rel (0) target = $region29
    $region28: #{tpu_custom_call.1} parent=1 // pred_region
      %35 = dma.done [#allocation4], 16
    $region29: #{tpu_custom_call.1} parent=1 // pred_fallthru
      _
    %36 = sfence
    %v37 = vld [vmem:[%s1] sm:$0xff]
    %v38 = vld [vmem:[%s1 + $0x8] sm:$0xff]
    %v39 = vld [vmem:[%s1 + $0x10] sm:$0xff]
    %v40 = vld [vmem:[%s1 + $0x18] sm:$0xff]
    %v41 = vld [vmem:[%s1 + $0x20] sm:$0xff]
    %v42 = vld [vmem:[%s1 + $0x28] sm:$0xff]
    %v43 = vld [vmem:[%s1 + $0x30] sm:$0xff]
    %v44 = vld [vmem:[%s1 + $0x38] sm:$0xff]
    %v45 = vld [vmem:[%s1 + $0x40] sm:$0xff]
    %v46 = vld [vmem:[%s1 + $0x48] sm:$0xff]
    %v47 = vld [vmem:[%s1 + $0x50] sm:$0xff]
    %v48 = vld [vmem:[%s1 + $0x58] sm:$0xff]
    %v49 = vld [vmem:[%s1 + $0x60] sm:$0xff]
    %v50 = vld [vmem:[%s1 + $0x68] sm:$0xff]
    %v51 = vld [vmem:[%s1 + $0x70] sm:$0xff]
    %v52 = vld [vmem:[%s1 + $0x78] sm:$0xff]
    %54 = vset.pattern.permute.xlu0 0
    %55 = vperm.xlu0 %54, %v37
    %v56 = vpop.permute.xlu0 %55
    %59 = vset.pattern.permute.xlu0 0
    %60 = vperm.xlu0 %59, %v38
    %v61 = vpop.permute.xlu0 %60
    %64 = vset.pattern.permute.xlu0 0
    %65 = vperm.xlu0 %64, %v39
    %v66 = vpop.permute.xlu0 %65
    %69 = vset.pattern.permute.xlu0 0
    %70 = vperm.xlu0 %69, %v40
    %v71 = vpop.permute.xlu0 %70
    %74 = vset.pattern.permute.xlu0 0
    %75 = vperm.xlu0 %74, %v41
    %v76 = vpop.permute.xlu0 %75
    %79 = vset.pattern.permute.xlu0 0
    %80 = vperm.xlu0 %79, %v42
    %v81 = vpop.permute.xlu0 %80
    %84 = vset.pattern.permute.xlu0 0
    %85 = vperm.xlu0 %84, %v43
    %v86 = vpop.permute.xlu0 %85
    %89 = vset.pattern.permute.xlu0 0
    %90 = vperm.xlu0 %89, %v44
    %v91 = vpop.permute.xlu0 %90
    %94 = vset.pattern.permute.xlu0 0
    %95 = vperm.xlu0 %94, %v45
    %v96 = vpop.permute.xlu0 %95
    %99 = vset.pattern.permute.xlu0 0
    %100 = vperm.xlu0 %99, %v46
    %v101 = vpop.permute.xlu0 %100
    %104 = vset.pattern.permute.xlu0 0
    %105 = vperm.xlu0 %104, %v47
    %v106 = vpop.permute.xlu0 %105
    %109 = vset.pattern.permute.xlu0 0
    %110 = vperm.xlu0 %109, %v48
    %v111 = vpop.permute.xlu0 %110
    %114 = vset.pattern.permute.xlu0 0
    %115 = vperm.xlu0 %114, %v49
    %v116 = vpop.permute.xlu0 %115
    %119 = vset.pattern.permute.xlu0 0
    %120 = vperm.xlu0 %119, %v50
    %v121 = vpop.permute.xlu0 %120
    %124 = vset.pattern.permute.xlu0 0
    %125 = vperm.xlu0 %124, %v51
    %v126 = vpop.permute.xlu0 %125
    %129 = vset.pattern.permute.xlu0 0
    %130 = vperm.xlu0 %129, %v52
    %v131 = vpop.permute.xlu0 %130
    %133 = vset.pattern.permute.xlu0 1
    %134 = vperm.xlu0 %133, %v37
    %v135 = vpop.permute.xlu0 %134
    %137 = vset.pattern.permute.xlu0 1
    %138 = vperm.xlu0 %137, %v38
    %v139 = vpop.permute.xlu0 %138
    %141 = vset.pattern.permute.xlu0 1
    %142 = vperm.xlu0 %141, %v39
    %v143 = vpop.permute.xlu0 %142
    %145 = vset.pattern.permute.xlu0 1
    %146 = vperm.xlu0 %145, %v40
    %v147 = vpop.permute.xlu0 %146
    %149 = vset.pattern.permute.xlu0 1
    %150 = vperm.xlu0 %149, %v41
    %v151 = vpop.permute.xlu0 %150
    %153 = vset.pattern.permute.xlu0 1
    %154 = vperm.xlu0 %153, %v42
    %v155 = vpop.permute.xlu0 %154
    %157 = vset.pattern.permute.xlu0 1
    %158 = vperm.xlu0 %157, %v43
    %v159 = vpop.permute.xlu0 %158
    %161 = vset.pattern.permute.xlu0 1
    %162 = vperm.xlu0 %161, %v44
    %v163 = vpop.permute.xlu0 %162
    %165 = vset.pattern.permute.xlu0 1
    %166 = vperm.xlu0 %165, %v45
    %v167 = vpop.permute.xlu0 %166
    %169 = vset.pattern.permute.xlu0 1
    %170 = vperm.xlu0 %169, %v46
    %v171 = vpop.permute.xlu0 %170
    %173 = vset.pattern.permute.xlu0 1
    %174 = vperm.xlu0 %173, %v47
    %v175 = vpop.permute.xlu0 %174
    %177 = vset.pattern.permute.xlu0 1
    %178 = vperm.xlu0 %177, %v48
    %v179 = vpop.permute.xlu0 %178
    %181 = vset.pattern.permute.xlu0 1
    %182 = vperm.xlu0 %181, %v49
    %v183 = vpop.permute.xlu0 %182
    %185 = vset.pattern.permute.xlu0 1
    %186 = vperm.xlu0 %185, %v50
    %v187 = vpop.permute.xlu0 %186
    %189 = vset.pattern.permute.xlu0 1
    %190 = vperm.xlu0 %189, %v51
    %v191 = vpop.permute.xlu0 %190
    %193 = vset.pattern.permute.xlu0 1
    %194 = vperm.xlu0 %193, %v52
    %v195 = vpop.permute.xlu0 %194
    %197 = vset.pattern.permute.xlu0 2
    %198 = vperm.xlu0 %197, %v37
    %v199 = vpop.permute.xlu0 %198
    %201 = vset.pattern.permute.xlu0 2
    %202 = vperm.xlu0 %201, %v38
    %v203 = vpop.permute.xlu0 %202
    %205 = vset.pattern.permute.xlu0 2
    %206 = vperm.xlu0 %205, %v39
    %v207 = vpop.permute.xlu0 %206
    %209 = vset.pattern.permute.xlu0 2
    %210 = vperm.xlu0 %209, %v40
    %v211 = vpop.permute.xlu0 %210
    %213 = vset.pattern.permute.xlu0 2
    %214 = vperm.xlu0 %213, %v41
    %v215 = vpop.permute.xlu0 %214
    %217 = vset.pattern.permute.xlu0 2
    %218 = vperm.xlu0 %217, %v42
    %v219 = vpop.permute.xlu0 %218
    %221 = vset.pattern.permute.xlu0 2
    %222 = vperm.xlu0 %221, %v43
    %v223 = vpop.permute.xlu0 %222
    %225 = vset.pattern.permute.xlu0 2
    %226 = vperm.xlu0 %225, %v44
    %v227 = vpop.permute.xlu0 %226
    %229 = vset.pattern.permute.xlu0 2
    %230 = vperm.xlu0 %229, %v45
    %v231 = vpop.permute.xlu0 %230
    %233 = vset.pattern.permute.xlu0 2
    %234 = vperm.xlu0 %233, %v46
    %v235 = vpop.permute.xlu0 %234
    %237 = vset.pattern.permute.xlu0 2
    %238 = vperm.xlu0 %237, %v47
    %v239 = vpop.permute.xlu0 %238
    %241 = vset.pattern.permute.xlu0 2
    %242 = vperm.xlu0 %241, %v48
    %v243 = vpop.permute.xlu0 %242
    %245 = vset.pattern.permute.xlu0 2
    %246 = vperm.xlu0 %245, %v49
    %v247 = vpop.permute.xlu0 %246
    %249 = vset.pattern.permute.xlu0 2
    %250 = vperm.xlu0 %249, %v50
    %v251 = vpop.permute.xlu0 %250
    %253 = vset.pattern.permute.xlu0 2
    %254 = vperm.xlu0 %253, %v51
    %v255 = vpop.permute.xlu0 %254
    %257 = vset.pattern.permute.xlu0 2
    %258 = vperm.xlu0 %257, %v52
    %v259 = vpop.permute.xlu0 %258
    %v261 = vld [vmem:[%s2] sm:$0xff]
    %v262 = vld [vmem:[%s2 + $0x8] sm:$0xff]
    %v263 = vld [vmem:[%s2 + $0x10] sm:$0xff]
    %v264 = vld [vmem:[%s2 + $0x18] sm:$0xff]
    %v265 = vld [vmem:[%s2 + $0x20] sm:$0xff]
    %v266 = vld [vmem:[%s2 + $0x28] sm:$0xff]
    %v267 = vld [vmem:[%s2 + $0x30] sm:$0xff]
    %v268 = vld [vmem:[%s2 + $0x38] sm:$0xff]
    %v269 = vld [vmem:[%s2 + $0x40] sm:$0xff]
    %v270 = vld [vmem:[%s2 + $0x48] sm:$0xff]
    %v271 = vld [vmem:[%s2 + $0x50] sm:$0xff]
    %v272 = vld [vmem:[%s2 + $0x58] sm:$0xff]
    %v273 = vld [vmem:[%s2 + $0x60] sm:$0xff]
    %v274 = vld [vmem:[%s2 + $0x68] sm:$0xff]
    %v275 = vld [vmem:[%s2 + $0x70] sm:$0xff]
    %v276 = vld [vmem:[%s2 + $0x78] sm:$0xff]
    %278 = vset.pattern.permute.xlu0 0
    %279 = vperm.xlu0 %278, %v261
    %v280 = vpop.permute.xlu0 %279
    %283 = vset.pattern.permute.xlu0 0
    %284 = vperm.xlu0 %283, %v262
    %v285 = vpop.permute.xlu0 %284
    %288 = vset.pattern.permute.xlu0 0
    %289 = vperm.xlu0 %288, %v263
    %v290 = vpop.permute.xlu0 %289
    %293 = vset.pattern.permute.xlu0 0
    %294 = vperm.xlu0 %293, %v264
    %v295 = vpop.permute.xlu0 %294
    %298 = vset.pattern.permute.xlu0 0
    %299 = vperm.xlu0 %298, %v265
    %v300 = vpop.permute.xlu0 %299
    %303 = vset.pattern.permute.xlu0 0
    %304 = vperm.xlu0 %303, %v266
    %v305 = vpop.permute.xlu0 %304
    %308 = vset.pattern.permute.xlu0 0
    %309 = vperm.xlu0 %308, %v267
    %v310 = vpop.permute.xlu0 %309
    %313 = vset.pattern.permute.xlu0 0
    %314 = vperm.xlu0 %313, %v268
    %v315 = vpop.permute.xlu0 %314
    %318 = vset.pattern.permute.xlu0 0
    %319 = vperm.xlu0 %318, %v269
    %v320 = vpop.permute.xlu0 %319
    %323 = vset.pattern.permute.xlu0 0
    %324 = vperm.xlu0 %323, %v270
    %v325 = vpop.permute.xlu0 %324
    %328 = vset.pattern.permute.xlu0 0
    %329 = vperm.xlu0 %328, %v271
    %v330 = vpop.permute.xlu0 %329
    %333 = vset.pattern.permute.xlu0 0
    %334 = vperm.xlu0 %333, %v272
    %v335 = vpop.permute.xlu0 %334
    %338 = vset.pattern.permute.xlu0 0
    %339 = vperm.xlu0 %338, %v273
    %v340 = vpop.permute.xlu0 %339
    %343 = vset.pattern.permute.xlu0 0
    %344 = vperm.xlu0 %343, %v274
    %v345 = vpop.permute.xlu0 %344
    %348 = vset.pattern.permute.xlu0 0
    %349 = vperm.xlu0 %348, %v275
    %v350 = vpop.permute.xlu0 %349
    %353 = vset.pattern.permute.xlu0 0
    %354 = vperm.xlu0 %353, %v276
    %v355 = vpop.permute.xlu0 %354
    %v357 = vld [vmem:[%s3] sm:$0x3]
    %s358 = sld [smem:[#allocation2]]
    %s359 = sld [smem:[#allocation2 + $0x1]]
    %v360 = vld [vmem:[%s0] sm:$0x7]
    %v361 = vlaneseq
    %v362 = vshrl.u32 %v361, 7
    %v363 = vsub.s32 0, %v362
    %v364 = vrot.slane %v360, %v363
    %v365 = vmul.f32 %v56, %v364
    %v366 = vmul.f32 %v61, %v364
    %v367 = vmul.f32 %v66, %v364
    %v368 = vmul.f32 %v71, %v364
    %v369 = vmul.f32 %v76, %v364
    %v370 = vmul.f32 %v81, %v364
    %v371 = vmul.f32 %v86, %v364
    %v372 = vmul.f32 %v91, %v364
    %v373 = vmul.f32 %v96, %v364
    %v374 = vmul.f32 %v101, %v364
    %v375 = vmul.f32 %v106, %v364
    %v376 = vmul.f32 %v111, %v364
    %v377 = vmul.f32 %v116, %v364
    %v378 = vmul.f32 %v121, %v364
    %v379 = vmul.f32 %v126, %v364
    %v380 = vmul.f32 %v131, %v364
    %v381 = vlaneseq
    %v382 = vshrl.u32 %v381, 7
    %v383 = vsub.s32 1, %v382
    %v384 = vrot.slane %v360, %v383
    %v385 = vmul.f32 %v135, %v384
    %v386 = vmul.f32 %v139, %v384
    %v387 = vmul.f32 %v143, %v384
    %v388 = vmul.f32 %v147, %v384
    %v389 = vmul.f32 %v151, %v384
    %v390 = vmul.f32 %v155, %v384
    %v391 = vmul.f32 %v159, %v384
    %v392 = vmul.f32 %v163, %v384
    %v393 = vmul.f32 %v167, %v384
    %v394 = vmul.f32 %v171, %v384
    %v395 = vmul.f32 %v175, %v384
    %v396 = vmul.f32 %v179, %v384
    %v397 = vmul.f32 %v183, %v384
    %v398 = vmul.f32 %v187, %v384
    %v399 = vmul.f32 %v191, %v384
    %v400 = vmul.f32 %v195, %v384
    %v401 = vadd.f32 %v365, %v385
    %v402 = vadd.f32 %v366, %v386
    %v403 = vadd.f32 %v367, %v387
    %v404 = vadd.f32 %v368, %v388
    %v405 = vadd.f32 %v369, %v389
    %v406 = vadd.f32 %v370, %v390
    %v407 = vadd.f32 %v371, %v391
    %v408 = vadd.f32 %v372, %v392
    %v409 = vadd.f32 %v373, %v393
    %v410 = vadd.f32 %v374, %v394
    %v411 = vadd.f32 %v375, %v395
    %v412 = vadd.f32 %v376, %v396
    %v413 = vadd.f32 %v377, %v397
    %v414 = vadd.f32 %v378, %v398
    %v415 = vadd.f32 %v379, %v399
    %v416 = vadd.f32 %v380, %v400
    %v417 = vlaneseq
    %v418 = vshrl.u32 %v417, 7
    %v419 = vsub.s32 2, %v418
    %v420 = vrot.slane %v360, %v419
    %v421 = vmul.f32 %v199, %v420
    %v422 = vmul.f32 %v203, %v420
    %v423 = vmul.f32 %v207, %v420
    %v424 = vmul.f32 %v211, %v420
    %v425 = vmul.f32 %v215, %v420
    %v426 = vmul.f32 %v219, %v420
    %v427 = vmul.f32 %v223, %v420
    %v428 = vmul.f32 %v227, %v420
    %v429 = vmul.f32 %v231, %v420
    %v430 = vmul.f32 %v235, %v420
    %v431 = vmul.f32 %v239, %v420
    %v432 = vmul.f32 %v243, %v420
    %v433 = vmul.f32 %v247, %v420
    %v434 = vmul.f32 %v251, %v420
    %v435 = vmul.f32 %v255, %v420
    %v436 = vmul.f32 %v259, %v420
    %v437 = vadd.f32 %v401, %v421
    %v438 = vadd.f32 %v402, %v422
    %v439 = vadd.f32 %v403, %v423
    %v440 = vadd.f32 %v404, %v424
    %v441 = vadd.f32 %v405, %v425
    %v442 = vadd.f32 %v406, %v426
    %v443 = vadd.f32 %v407, %v427
    %v444 = vadd.f32 %v408, %v428
    %v445 = vadd.f32 %v409, %v429
    %v446 = vadd.f32 %v410, %v430
    %v447 = vadd.f32 %v411, %v431
    %v448 = vadd.f32 %v412, %v432
    %v449 = vadd.f32 %v413, %v433
    %v450 = vadd.f32 %v414, %v434
    %v451 = vadd.f32 %v415, %v435
    %v452 = vadd.f32 %v416, %v436
    %v453 = vadd.f32 %v437, %v280
    %v454 = vadd.f32 %v438, %v285
    %v455 = vadd.f32 %v439, %v290
    %v456 = vadd.f32 %v440, %v295
    %v457 = vadd.f32 %v441, %v300
    %v458 = vadd.f32 %v442, %v305
    %v459 = vadd.f32 %v443, %v310
    %v460 = vadd.f32 %v444, %v315
    %v461 = vadd.f32 %v445, %v320
    %v462 = vadd.f32 %v446, %v325
    %v463 = vadd.f32 %v447, %v330
    %v464 = vadd.f32 %v448, %v335
    %v465 = vadd.f32 %v449, %v340
    %v466 = vadd.f32 %v450, %v345
    %v467 = vadd.f32 %v451, %v350
    %v468 = vadd.f32 %v452, %v355
    %v469 = vmax.f32 %v453, 0.0
    %v470 = vmax.f32 %v454, 0.0
    %v471 = vmax.f32 %v455, 0.0
    %v472 = vmax.f32 %v456, 0.0
    %v473 = vmax.f32 %v457, 0.0
    %v474 = vmax.f32 %v458, 0.0
    %v475 = vmax.f32 %v459, 0.0
    %v476 = vmax.f32 %v460, 0.0
    %v477 = vmax.f32 %v461, 0.0
    %v478 = vmax.f32 %v462, 0.0
    %v479 = vmax.f32 %v463, 0.0
    %v480 = vmax.f32 %v464, 0.0
    %v481 = vmax.f32 %v465, 0.0
    %v482 = vmax.f32 %v466, 0.0
    %v483 = vmax.f32 %v467, 0.0
    %v484 = vmax.f32 %v468, 0.0
    %485 = vmatprep.subr.mxu0 0.0
    %486 = vmatpush1.msra.mxu0 %v484
    %487 = vmatprep.subr.mxu0 0.0
    %488 = vmatpush1.msra.mxu0 %v483
    %489 = vmatprep.subr.mxu0 0.0
    %490 = vmatpush1.msra.mxu0 %v482
    %491 = vmatprep.subr.mxu0 0.0
    %492 = vmatpush1.msra.mxu0 %v481
    %493 = vmatprep.subr.mxu0 0.0
    %494 = vmatpush1.msra.mxu0 %v480
    %495 = vmatprep.subr.mxu0 0.0
    %496 = vmatpush1.msra.mxu0 %v479
    %497 = vmatprep.subr.mxu0 0.0
    %498 = vmatpush1.msra.mxu0 %v478
    %499 = vmatprep.subr.mxu0 0.0
    %500 = vmatpush1.msra.mxu0 %v477
    %501 = vmatprep.subr.mxu0 0.0
    %502 = vmatpush1.msra.mxu0 %v476
    %503 = vmatprep.subr.mxu0 0.0
    %504 = vmatpush1.msra.mxu0 %v475
    %505 = vmatprep.subr.mxu0 0.0
    %506 = vmatpush1.msra.mxu0 %v474
    %507 = vmatprep.subr.mxu0 0.0
    %508 = vmatpush1.msra.mxu0 %v473
    %509 = vmatprep.subr.mxu0 0.0
    %510 = vmatpush1.msra.mxu0 %v472
    %511 = vmatprep.subr.mxu0 0.0
    %512 = vmatpush1.msra.mxu0 %v471
    %513 = vmatprep.subr.mxu0 0.0
    %514 = vmatpush1.msra.mxu0 %v470
    %515 = vmatprep.subr.mxu0 0.0
    %516 = vmatpush1.msra.mxu0 %v469
    %517 = vmatprep.subr.mxu0 0.0
    %518 = vmatpush2.msra.mxu0 0.0
    %519 = vmatprep.subr.mxu0 0.0
    %520 = vmatpush2.msra.mxu0 0.0
    %521 = vmatprep.subr.mxu0 0.0
    %522 = vmatpush2.msra.mxu0 0.0
    %523 = vmatprep.subr.mxu0 0.0
    %524 = vmatpush2.msra.mxu0 0.0
    %525 = vmatprep.subr.mxu0 0.0
    %526 = vmatpush2.msra.mxu0 0.0
    %527 = vmatprep.subr.mxu0 0.0
    %528 = vmatpush2.msra.mxu0 0.0
    %529 = vmatprep.subr.mxu0 0.0
    %530 = vmatpush2.msra.mxu0 0.0
    %531 = vmatprep.subr.mxu0 0.0
    %532 = vmatpush2.msra.mxu0 0.0
    %533 = vmatprep.subr.mxu0 0.0
    %534 = vmatpush2.msra.mxu0 0.0
    %535 = vmatprep.subr.mxu0 0.0
    %536 = vmatpush2.msra.mxu0 0.0
    %537 = vmatprep.subr.mxu0 0.0
    %538 = vmatpush2.msra.mxu0 0.0
    %539 = vmatprep.subr.mxu0 0.0
    %540 = vmatpush2.msra.mxu0 0.0
    %541 = vmatprep.subr.mxu0 0.0
    %542 = vmatpush2.msra.mxu0 0.0
    %543 = vmatprep.subr.mxu0 0.0
    %544 = vmatpush2.msra.mxu0 0.0
    %545 = vmatprep.subr.mxu0 0.0
    %546 = vmatpush2.msra.mxu0 0.0
    %547 = vmatprep.subr.mxu0 0.0
    %548 = vmatpush2.msra.mxu0 0.0
    %549 = vmatprep.mubr.f32.mxu0 0.0
    %550 = vmatmul.mubr.f32.gmra.mxu0 %v357
    %v551 = vpop.f32.mrf.mxu0
    %v552 = vadd.f32 0.0, %v551
    %v553 = vpop.f32.mrf.mxu0
    %554 = vdwg.mxu0
    %v555 = vstv %s358
    %v556 = vadd.f32 %v552, %v555
    %v557 = vstv %s359
    %v558 = vadd.f32 %v552, %v557
    %vm559 = vcmp.gt.f32.partialorder %v558, 20.0
    %v560 = vmin.f32 %v558, 20.0
    %v561 = vmul.f32 %v560, 1.442695
    %v562 = vpow.pop %v561
    %v563 = vadd.f32 %v562, 1.0
    %v564 = vlog2.pop %v563
    %v565 = vmul.f32 %v564, 0.6931472
    %v566 = vmul.f32 -0.5, %v562
    %v567 = vadd.f32 %v566, 1.0
    %v568 = vmul.f32 %v567, %v562
    %v569 = vand.u32 2147483647, %v562
    %vm570 = vcmp.lt.f32.partialorder %v569, 0.0004427343
    %v571 = vsel %vm570, %v568, %v565
    %v572 = vsel %vm559, %v558, %v571
    %v573 = vmax.f32 %v572, 1e-06
    %v574 = vld [vmem:[%s5] sm:$0x1]
    %v576 = vlaneseq
    %v577 = vshrl.u32 %v576, 7
    %v578 = vsub.s32 0, %v577
    %v579 = vrot.slane %v574, %v578
    %v581 = vmul.f32 %v573, %v579
    %v583 = vrot.slane %v581, 1
    %v585 = vadd.f32 %v556, %v583
    %v586 = vtanh.pop %v585
    %v587 = vmul.f32 %v586, 35.0
    %588 = vst [vmem:[#allocation5] sm:$0x1] %v587
    // Predicated region
    $region30: #{tpu_custom_call.1} parent=1 // pred_check
      _
    $region31: #{tpu_custom_call.1} parent=1 // pred_check_branch
      %590 = sbr.rel (0) target = $region33
    $region32: #{tpu_custom_call.1} parent=1 // pred_region
      %s592 = ssub.s32 16, 16
      %593 = vsyncadd [#allocation3], %s592
      %s595 = sshll.u32 [#allocation5], 4
      %s596 = int_to_ptr.vmem [resolvable:$true] %s595
      %598 = dma.vmem_to_hbm [thread:$0]  %s596, 16, %s6, [#allocation3]
    $region33: #{tpu_custom_call.1} parent=1 // pred_fallthru
      _
    // Predicated region
    $region34: #{tpu_custom_call.1} parent=1 // pred_check
      _
    $region35: #{tpu_custom_call.1} parent=1 // pred_check_branch
      %600 = sbr.rel (0) target = $region37
    $region36: #{tpu_custom_call.1} parent=1 // pred_region
      %601 = dma.done [#allocation3], 16
    $region37: #{tpu_custom_call.1} parent=1 // pred_fallthru
      _
    %602 = vsyncpa [#allocation3], 1
    %603 = vsyncpa [#allocation4], 1

</llo_original>
